<compile_context>
chip_gen: v5e
topology: v5e:2x2
jax: 0.10.0
libtpu: 0.0.40
codegen_flags: <defaults>
</compile_context>

<pallas_src>
import numpy as np
import jax
import jax.numpy as jnp
from jax.experimental import pallas as pl
from jax.experimental.pallas import tpu as pltpu


def local_graph_kernel(ppr_ref, adj_ref, embT_ref, ones_ent_ref, noise_ref,
                       out_ref):
    """Fused LocalGraph.forward hot path.

    Inputs (all VMEM, single block):
      ppr_ref      (N, N) f32  dense PPR matrix
      adj_ref      (N, N) f32  dense adj_2
      embT_ref     (D, N) f32  node embeddings, transposed (nodes on lanes)
      ones_ent_ref (2, N) f32  row 0 = ones, row 1 = per-node entropy
      noise_ref    (1, N) f32  uniform(0,1) noise for the Gumbel perturbation
    Output (lane-dense, packed):
      out_ref      (2, N) f32  row 0 = noisy log-scores (pre-clamp),
                               row 1 = row degree of adj_2 (for orphan detect)
    """
    ppr = ppr_ref[...]
    adj = adj_ref[...]
    embT = embT_ref[...]
    ones_ent = ones_ent_ref[...]
    u = noise_ref[...]

    ent = ones_ent[1:2, :]                                           # (1, N)

    # Fused degree + adj_2 @ entropy: one two-column MXU matmul, row layout.
    #   db[0, i] = sum_j adj[i, j]            (row degree)
    #   db[1, i] = sum_j adj[i, j] * ent[j]   (adj_2 @ entropy)
    db = jnp.einsum('cj,ij->ci', ones_ent, adj,
                    preferred_element_type=jnp.float32)              # (2, N)
    deg = db[0:1, :]
    adj_ent = db[1:2, :]

    # subgraphEmbeds^T = (pprMat @ embeds)^T, kept transposed so per-node
    # reductions land on the sublane axis and the scalar tail stays (1, N).
    subT = jnp.einsum('dj,ij->di', embT, ppr,
                      preferred_element_type=jnp.float32)            # (D, N)

    # entropy_mean_nor = minmax-normalized (adj@e + e) / (deg + 1)
    em1 = (adj_ent + ent) / (deg + 1.0)
    mn = jnp.min(em1, axis=-1, keepdims=True)                        # (1, 1)
    mx = jnp.max(em1, axis=-1, keepdims=True)                        # (1, 1)
    rng = mx - mn
    em_nor = (em1 - mn) / jnp.where(rng > 0.0, rng, 1.0)             # guarded

    # entropy_mean_l = (2*m*e + eps) / (m^2 + e^2 + eps), m = adj@e / (deg+eps)
    em2 = adj_ent / (deg + 1e-8)
    em_l = (2.0 * em2 * ent + 1e-8) / (em2 * em2 + ent * ent + 1e-8)

    # Fused cosine similarity  <F.normalize(sub), F.normalize(emb)>:
    # no normalized (N, D) temporaries; divisions become EUP rsqrt.
    dotp = jnp.sum(subT * embT, axis=0, keepdims=True)               # (1, N)
    sub_sq = jnp.sum(subT * subT, axis=0, keepdims=True)             # (1, N)
    emb_sq = jnp.sum(embT * embT, axis=0, keepdims=True)             # (1, N)
    cos = (dotp
           * jax.lax.rsqrt(jnp.maximum(sub_sq, 1e-24))
           * jax.lax.rsqrt(jnp.maximum(emb_sq, 1e-24)))

    pre = cos * em_l + em_nor

    # log(sigmoid(pre)) == -softplus(-pre), numerically stable form.
    z = -pre
    log_s = -(jnp.maximum(z, 0.0) + jnp.log(1.0 + jnp.exp(-jnp.abs(z))))

    # makeNoise: Gumbel(0,1) = -log(-log(U)) from the host-supplied uniforms.
    uc = jnp.clip(u, 1e-7, 1.0 - 1e-7)
    gumbel = -jnp.log(-jnp.log(uc))

    out_ref[0:1, :] = log_s + gumbel
    out_ref[1:2, :] = deg


def local_graph_forward(pprMat, adj_2, embeds, entropy, seed, seed_num):
    """JAX/Pallas replacement of LocalGraph.forward (dense sparse matrices).

    Returns (scores, seeds) like the PyTorch module:
      scores: (N,) f32, clamped to [-10, 10]
      seeds : 1-D int array, top-k noisy-score nodes followed by orphan nodes
    """
    N, D = embeds.shape

    # Layout plumbing (cheap XLA-side transposes/reshapes): nodes on lanes.
    emb_T = jnp.transpose(embeds)                                    # (D, N)
    ent_row = jnp.reshape(entropy, (1, N))                           # (1, N)
    ones_ent = jnp.concatenate(
        [jnp.ones((1, N), jnp.float32), ent_row], axis=0)            # (2, N)

    # Uniform noise for the Gumbel perturbation (no TPU-only PRNG primitives).
    noise_u = jax.random.uniform(jax.random.PRNGKey(seed), (1, N),
                                 dtype=jnp.float32)

    # TODO(synk): for realistic graph sizes (N >= a few thousand) this must be
    # row-tiled (BlockSpec((tm, N)) over a "parallel" grid axis, bf16 matmuls,
    # vmem_limit_bytes); single-block VMEM is only valid at these toy sizes.
    packed = pl.pallas_call(
        local_graph_kernel,
        out_shape=jax.ShapeDtypeStruct((2, N), jnp.float32),
        in_specs=[
            pl.BlockSpec(memory_space=pltpu.MemorySpace.VMEM),  # pprMat
            pl.BlockSpec(memory_space=pltpu.MemorySpace.VMEM),  # adj_2
            pl.BlockSpec(memory_space=pltpu.MemorySpace.VMEM),  # embeds^T
            pl.BlockSpec(memory_space=pltpu.MemorySpace.VMEM),  # [ones; ent]
            pl.BlockSpec(memory_space=pltpu.MemorySpace.VMEM),  # uniform noise
        ],
        out_specs=pl.BlockSpec(memory_space=pltpu.MemorySpace.VMEM),
    )(pprMat, adj_2, emb_T, ones_ent, noise_u)

    scores_noisy = packed[0]                                         # (N,)
    deg = packed[1]                                                  # (N,)

    # top-k on the noisy (un-clamped) scores, exactly like the reference.
    _, seeds_topk = jax.lax.top_k(scores_noisy, seed_num)
    scores = jnp.clip(scores_noisy, -10.0, 10.0)

    # Orphans (degree == 0) have a data-dependent count -> one host sync at
    # the very end, after all device work has been issued.
    deg_host, seeds_host = jax.device_get((deg, seeds_topk))
    orphan = np.where(np.asarray(deg_host) == 0.0)[0].astype(np.int32)
    seeds = np.concatenate([np.asarray(seeds_host, dtype=np.int32), orphan])
    return scores, seeds


# TODO(synk): getPPREntropy (pickle/file-based PPR precomputation) has no Pallas
# equivalent; pprMat / entropy are synthesized in-script and sparse tensors are
# densified for the TPU kernel.

if __name__ == "__main__":
    N, D, SEED_NUM = 64, 32, 8

    key = jax.random.PRNGKey(0)
    k_adj, k_ppr, k_emb, k_ent = jax.random.split(key, 4)

    # Random sparse-ish 0/1 adjacency (dense f32), with node 0 made an orphan.
    adj = (jax.random.uniform(k_adj, (N, N)) < 0.10).astype(jnp.float32)
    adj = adj.at[jnp.arange(N), jnp.arange(N)].set(0.0)
    adj = adj.at[0, :].set(0.0)                    # orphan node (degree 0)

    # Row-stochastic PPR-like matrix.
    ppr = jax.nn.softmax(jax.random.normal(k_ppr, (N, N)), axis=-1)

    embeds = jax.random.normal(k_emb, (N, D), dtype=jnp.float32)

    # Positive per-node "entropy" values, shape (N, 1).
    entropy = jax.random.uniform(k_ent, (N, 1), minval=0.1, maxval=3.0)

    scores, seeds = local_graph_forward(ppr, adj, embeds, entropy,
                                        seed=0, seed_num=SEED_NUM)
    jax.block_until_ready(scores)

    assert scores.shape == (N,)
    assert seeds.ndim == 1 and seeds.shape[0] >= SEED_NUM
    assert 0 in set(np.asarray(seeds).tolist())        # orphan node included
    assert not bool(jnp.isnan(scores).any())
    print("KERNEL_OK")
</pallas_src>

<mosaic_0001>
module attributes {stable_mosaic.version = 11 : i64} {
  func.func @local_graph_kernel(%arg0: memref<64x64xf32, #tpu.memory_space<vmem>>, %arg1: memref<64x64xf32, #tpu.memory_space<vmem>>, %arg2: memref<32x64xf32, #tpu.memory_space<vmem>>, %arg3: memref<2x64xf32, #tpu.memory_space<vmem>>, %arg4: memref<1x64xf32, #tpu.memory_space<vmem>>, %arg5: memref<2x64xf32, #tpu.memory_space<vmem>>) attributes {dimension_semantics = [], scalar_prefetch = 0 : i64, scratch_operands = 0 : i64, tpu.core_type = #tpu.core_type<tc>} {
    %c0 = arith.constant 0 : index
    %c0_0 = arith.constant 0 : index
    %0 = vector.load %arg0[%c0, %c0_0] : memref<64x64xf32, #tpu.memory_space<vmem>>, vector<64x64xf32>
    %c0_1 = arith.constant 0 : index
    %c0_2 = arith.constant 0 : index
    %1 = vector.load %arg1[%c0_1, %c0_2] : memref<64x64xf32, #tpu.memory_space<vmem>>, vector<64x64xf32>
    %c0_3 = arith.constant 0 : index
    %c0_4 = arith.constant 0 : index
    %2 = vector.load %arg2[%c0_3, %c0_4] : memref<32x64xf32, #tpu.memory_space<vmem>>, vector<32x64xf32>
    %c0_5 = arith.constant 0 : index
    %c0_6 = arith.constant 0 : index
    %3 = vector.load %arg3[%c0_5, %c0_6] : memref<2x64xf32, #tpu.memory_space<vmem>>, vector<2x64xf32>
    %c0_7 = arith.constant 0 : index
    %c0_8 = arith.constant 0 : index
    %4 = vector.load %arg4[%c0_7, %c0_8] : memref<1x64xf32, #tpu.memory_space<vmem>>, vector<1x64xf32>
    %5 = vector.extract_strided_slice %3 {offsets = [1, 0], sizes = [1, 64], strides = [1, 1]} : vector<2x64xf32> to vector<1x64xf32>
    "tpu.trace_start"() <{level = 10 : i32, message = "cj,ij->ci"}> : () -> ()
    %cst = arith.constant dense<0.000000e+00> : vector<2x64xf32>
    %6 = tpu.matmul %3, %1, %cst {dimension_numbers = #tpu.dot_dimension_numbers<[1], [1], [0], [0], [0, 0, 1, 0], [], []>} : vector<2x64xf32>, vector<64x64xf32>, vector<2x64xf32> -> vector<2x64xf32>
    "tpu.trace_stop"() : () -> ()
    %7 = vector.extract_strided_slice %6 {offsets = [0, 0], sizes = [1, 64], strides = [1, 1]} : vector<2x64xf32> to vector<1x64xf32>
    %8 = vector.extract_strided_slice %6 {offsets = [1, 0], sizes = [1, 64], strides = [1, 1]} : vector<2x64xf32> to vector<1x64xf32>
    "tpu.trace_start"() <{level = 10 : i32, message = "dj,ij->di"}> : () -> ()
    %cst_9 = arith.constant dense<0.000000e+00> : vector<32x64xf32>
    %9 = tpu.matmul %2, %0, %cst_9 {dimension_numbers = #tpu.dot_dimension_numbers<[1], [1], [0], [0], [0, 0, 1, 0], [], []>} : vector<32x64xf32>, vector<64x64xf32>, vector<32x64xf32> -> vector<32x64xf32>
    "tpu.trace_stop"() : () -> ()
    %10 = arith.addf %8, %5 : vector<1x64xf32>
    %cst_10 = arith.constant 1.000000e+00 : f32
    %11 = vector.broadcast %cst_10 : f32 to vector<1x64xf32>
    %12 = arith.addf %7, %11 : vector<1x64xf32>
    %13 = arith.divf %10, %12 : vector<1x64xf32>
    %cst_11 = arith.constant dense<0x7F800000> : vector<1xf32>
    %14 = vector.multi_reduction <minimumf>, %13, %cst_11 [1] : vector<1x64xf32> to vector<1xf32>
    %15 = vector.shape_cast %14 : vector<1xf32> to vector<1x1xf32>
    %cst_12 = arith.constant dense<0xFF800000> : vector<1xf32>
    %16 = vector.multi_reduction <maximumf>, %13, %cst_12 [1] : vector<1x64xf32> to vector<1xf32>
    %17 = vector.shape_cast %16 : vector<1xf32> to vector<1x1xf32>
    %18 = arith.subf %17, %15 : vector<1x1xf32>
    %19 = vector.broadcast %15 : vector<1x1xf32> to vector<1x64xf32>
    %20 = arith.subf %13, %19 : vector<1x64xf32>
    %cst_13 = arith.constant 0.000000e+00 : f32
    %21 = vector.broadcast %cst_13 : f32 to vector<1x1xf32>
    %22 = arith.cmpf ogt, %18, %21 : vector<1x1xf32>
    %cst_14 = arith.constant 1.000000e+00 : f32
    %23 = vector.broadcast %cst_14 : f32 to vector<1x1xf32>
    %24 = arith.select %22, %18, %23 : vector<1x1xi1>, vector<1x1xf32>
    %25 = vector.broadcast %24 : vector<1x1xf32> to vector<1x64xf32>
    %26 = arith.divf %20, %25 : vector<1x64xf32>
    %cst_15 = arith.constant 9.99999993E-9 : f32
    %27 = vector.broadcast %cst_15 : f32 to vector<1x64xf32>
    %28 = arith.addf %7, %27 : vector<1x64xf32>
    %29 = arith.divf %8, %28 : vector<1x64xf32>
    %cst_16 = arith.constant 2.000000e+00 : f32
    %30 = vector.broadcast %cst_16 : f32 to vector<1x64xf32>
    %31 = arith.mulf %30, %29 : vector<1x64xf32>
    %32 = arith.mulf %31, %5 : vector<1x64xf32>
    %cst_17 = arith.constant 9.99999993E-9 : f32
    %33 = vector.broadcast %cst_17 : f32 to vector<1x64xf32>
    %34 = arith.addf %32, %33 : vector<1x64xf32>
    %35 = arith.mulf %29, %29 : vector<1x64xf32>
    %36 = arith.mulf %5, %5 : vector<1x64xf32>
    %37 = arith.addf %35, %36 : vector<1x64xf32>
    %cst_18 = arith.constant 9.99999993E-9 : f32
    %38 = vector.broadcast %cst_18 : f32 to vector<1x64xf32>
    %39 = arith.addf %37, %38 : vector<1x64xf32>
    %40 = arith.divf %34, %39 : vector<1x64xf32>
    %41 = arith.mulf %9, %2 : vector<32x64xf32>
    %cst_19 = arith.constant dense<0.000000e+00> : vector<64xf32>
    %42 = vector.multi_reduction <add>, %41, %cst_19 [0] : vector<32x64xf32> to vector<64xf32>
    %43 = vector.shape_cast %42 : vector<64xf32> to vector<1x64xf32>
    %44 = arith.mulf %9, %9 : vector<32x64xf32>
    %cst_20 = arith.constant dense<0.000000e+00> : vector<64xf32>
    %45 = vector.multi_reduction <add>, %44, %cst_20 [0] : vector<32x64xf32> to vector<64xf32>
    %46 = vector.shape_cast %45 : vector<64xf32> to vector<1x64xf32>
    %47 = arith.mulf %2, %2 : vector<32x64xf32>
    %cst_21 = arith.constant dense<0.000000e+00> : vector<64xf32>
    %48 = vector.multi_reduction <add>, %47, %cst_21 [0] : vector<32x64xf32> to vector<64xf32>
    %49 = vector.shape_cast %48 : vector<64xf32> to vector<1x64xf32>
    %cst_22 = arith.constant 1.000000e-24 : f32
    %50 = vector.broadcast %cst_22 : f32 to vector<1x64xf32>
    %51 = arith.maximumf %46, %50 : vector<1x64xf32>
    %52 = math.rsqrt %51 : vector<1x64xf32>
    %53 = arith.mulf %43, %52 : vector<1x64xf32>
    %cst_23 = arith.constant 1.000000e-24 : f32
    %54 = vector.broadcast %cst_23 : f32 to vector<1x64xf32>
    %55 = arith.maximumf %49, %54 : vector<1x64xf32>
    %56 = math.rsqrt %55 : vector<1x64xf32>
    %57 = arith.mulf %53, %56 : vector<1x64xf32>
    %58 = arith.mulf %57, %40 : vector<1x64xf32>
    %59 = arith.addf %58, %26 : vector<1x64xf32>
    %cst_24 = arith.constant 0.000000e+00 : f32
    %60 = vector.broadcast %cst_24 : f32 to vector<1x64xf32>
    %61 = arith.subf %60, %59 : vector<1x64xf32>
    %cst_25 = arith.constant 0.000000e+00 : f32
    %62 = vector.broadcast %cst_25 : f32 to vector<1x64xf32>
    %63 = arith.maximumf %61, %62 : vector<1x64xf32>
    %64 = math.absf %61 : vector<1x64xf32>
    %cst_26 = arith.constant 0.000000e+00 : f32
    %65 = vector.broadcast %cst_26 : f32 to vector<1x64xf32>
    %66 = arith.subf %65, %64 : vector<1x64xf32>
    %67 = math.exp %66 : vector<1x64xf32>
    %cst_27 = arith.constant 1.000000e+00 : f32
    %68 = vector.broadcast %cst_27 : f32 to vector<1x64xf32>
    %69 = arith.addf %68, %67 : vector<1x64xf32>
    %70 = math.log %69 : vector<1x64xf32>
    %71 = arith.addf %63, %70 : vector<1x64xf32>
    %cst_28 = arith.constant 0.000000e+00 : f32
    %72 = vector.broadcast %cst_28 : f32 to vector<1x64xf32>
    %73 = arith.subf %72, %71 : vector<1x64xf32>
    %cst_29 = arith.constant 1.000000e-07 : f32
    %cst_30 = arith.constant 0.99999988 : f32
    %74 = vector.broadcast %cst_29 : f32 to vector<1x64xf32>
    %75 = arith.maximumf %74, %4 : vector<1x64xf32>
    %76 = vector.broadcast %cst_30 : f32 to vector<1x64xf32>
    %77 = arith.minimumf %76, %75 : vector<1x64xf32>
    %78 = math.log %77 : vector<1x64xf32>
    %cst_31 = arith.constant 0.000000e+00 : f32
    %79 = vector.broadcast %cst_31 : f32 to vector<1x64xf32>
    %80 = arith.subf %79, %78 : vector<1x64xf32>
    %81 = math.log %80 : vector<1x64xf32>
    %cst_32 = arith.constant 0.000000e+00 : f32
    %82 = vector.broadcast %cst_32 : f32 to vector<1x64xf32>
    %83 = arith.subf %82, %81 : vector<1x64xf32>
    %84 = arith.addf %73, %83 : vector<1x64xf32>
    %c0_33 = arith.constant 0 : index
    %c0_34 = arith.constant 0 : index
    %85 = vector.load %arg5[%c0_33, %c0_34] : memref<2x64xf32, #tpu.memory_space<vmem>>, vector<1x64xf32>
    tpu.vector_store %arg5[%c0_33, %c0_34], %84 {strides = array<i32>} : memref<2x64xf32, #tpu.memory_space<vmem>>, vector<1x64xf32>,
    %c1 = arith.constant 1 : index
    %c0_35 = arith.constant 0 : index
    %86 = vector.load %arg5[%c1, %c0_35] : memref<2x64xf32, #tpu.memory_space<vmem>>, vector<1x64xf32>
    tpu.vector_store %arg5[%c1, %c0_35], %7 {strides = array<i32>} : memref<2x64xf32, #tpu.memory_space<vmem>>, vector<1x64xf32>,
    return
  }
}

</mosaic_0001>

<llo_original>
// kernel: tpu_custom_call.1
$region0: #{tpu_custom_call.1}
  #allocation0 [shape = 'u32[]', space=smem, size = 0x4, offset = 0x4, fixed_abs, tag = 'smem constant byte address 0x4 - core index']
  #allocation1 [shape = 'u32[72,128]{1,0:T(1,128)}', space=vmem, size = 0x9000, scoped, tag = 'internal scratch']
  %s0 = inlined_call_operand.hbm [shape: f32[64,64], index: 0, kind: input, shape index: {}]
  %s1 = inlined_call_operand.hbm [shape: f32[64,64], index: 1, kind: input, shape index: {}]
  %s2 = inlined_call_operand.hbm [shape: f32[32,64], index: 2, kind: input, shape index: {}]
  %s3 = inlined_call_operand.vmem [shape: f32[2,64], index: 3, kind: input, shape index: {}]
  %s4 = inlined_call_operand.vmem [shape: f32[1,64], index: 4, kind: input, shape index: {}]
  %s5 = inlined_call_operand.hbm [shape: f32[2,64], index: 5, kind: output, shape index: {}]
  %s6 = sld [smem:[#allocation0]]
  $region42: #{tpu_custom_call.1} parent=0
    _
  %s8 = ssub.s32 1, %s6
  %s9 = scalar_select 0, %s8, %s6
  $region1: #{tpu_custom_call.1} parent=0
    #allocation2 [shape = 'u8[32768]{0}', space=vmem, size = 0x8000, scoped, tag = 'input window, operand 0, single buffered']
    #allocation3 [shape = 's32[1]{0}', space=sflag, size = 0x4, scoped, tag = 'scoped memory for tpu_custom_call.1']
    #allocation4 [shape = 's32[1]{0}', space=sflag, size = 0x4, scoped, tag = 'scoped memory for tpu_custom_call.1']
    #allocation5 [shape = 'u8[32768]{0}', space=vmem, size = 0x8000, scoped, tag = 'input window, operand 1, single buffered']
    #allocation6 [shape = 's32[1]{0}', space=sflag, size = 0x4, scoped, tag = 'scoped memory for tpu_custom_call.1']
    #allocation7 [shape = 'u8[16384]{0}', space=vmem, size = 0x4000, scoped, tag = 'input window, operand 2, single buffered']
    #allocation8 [shape = 'u8[1024]{0}', space=vmem, size = 0x400, scoped, tag = 'output window, operand 0, single buffered']
    %10 = vsyncpa [#allocation3], 0
    %11 = vsyncpa [#allocation6], 0
    %12 = vsyncpa [#allocation4], 0
    // Predicated region
    $region2: #{tpu_custom_call.1} parent=1 // pred_check
      _
    $region3: #{tpu_custom_call.1} parent=1 // pred_check_branch
      %14 = sbr.rel (0) target = $region5
    $region4: #{tpu_custom_call.1} parent=1 // pred_region
      %16 = vsyncadd [#allocation3], 0
      %s17 = sshll.u32 %s0, 4
      %s18 = int_to_ptr.hbm [resolvable:$true] %s17
      %s19 = sshll.u32 [#allocation2], 4
      %s20 = int_to_ptr.vmem [resolvable:$true] %s19
      %25 = dma.hbm_to_vmem [thread:$0]  %s18, 1024, %s20, [#allocation3], 128, 128, 8
    $region5: #{tpu_custom_call.1} parent=1 // pred_fallthru
      _
    // Predicated region
    $region6: #{tpu_custom_call.1} parent=1 // pred_check
      _
    $region7: #{tpu_custom_call.1} parent=1 // pred_check_branch
      %27 = sbr.rel (0) target = $region9
    $region8: #{tpu_custom_call.1} parent=1 // pred_region
      %29 = vsyncadd [#allocation6], 0
      %s30 = sshll.u32 %s1, 4
      %s31 = int_to_ptr.hbm [resolvable:$true] %s30
      %s32 = sshll.u32 [#allocation5], 4
      %s33 = int_to_ptr.vmem [resolvable:$true] %s32
      %38 = dma.hbm_to_vmem [thread:$0]  %s31, 1024, %s33, [#allocation6], 128, 128, 8
    $region9: #{tpu_custom_call.1} parent=1 // pred_fallthru
      _
    // Predicated region
    $region10: #{tpu_custom_call.1} parent=1 // pred_check
      _
    $region11: #{tpu_custom_call.1} parent=1 // pred_check_branch
      %40 = sbr.rel (0) target = $region13
    $region12: #{tpu_custom_call.1} parent=1 // pred_region
      %42 = vsyncadd [#allocation6], 0
      %s43 = sshll.u32 %s2, 4
      %s44 = int_to_ptr.hbm [resolvable:$true] %s43
      %s45 = sshll.u32 [#allocation7], 4
      %s46 = int_to_ptr.vmem [resolvable:$true] %s45
      %51 = dma.hbm_to_vmem [thread:$0]  %s44, 512, %s46, [#allocation6], 128, 128, 8
    $region13: #{tpu_custom_call.1} parent=1 // pred_fallthru
      _
    // Predicated region
    $region14: #{tpu_custom_call.1} parent=1 // pred_check
      _
    $region15: #{tpu_custom_call.1} parent=1 // pred_check_branch
      %53 = sbr.rel (0) target = $region17
    $region16: #{tpu_custom_call.1} parent=1 // pred_region
      _
    $region17: #{tpu_custom_call.1} parent=1 // pred_fallthru
      _
    // Predicated region
    $region18: #{tpu_custom_call.1} parent=1 // pred_check
      _
    $region19: #{tpu_custom_call.1} parent=1 // pred_check_branch
      %55 = sbr.rel (0) target = $region21
    $region20: #{tpu_custom_call.1} parent=1 // pred_region
      _
    $region21: #{tpu_custom_call.1} parent=1 // pred_fallthru
      _
    // Predicated region
    $region22: #{tpu_custom_call.1} parent=1 // pred_check
      _
    $region23: #{tpu_custom_call.1} parent=1 // pred_check_branch
      %57 = sbr.rel (0) target = $region25
    $region24: #{tpu_custom_call.1} parent=1 // pred_region
      %59 = dma.done [#allocation3], 1024
    $region25: #{tpu_custom_call.1} parent=1 // pred_fallthru
      _
    // Predicated region
    $region26: #{tpu_custom_call.1} parent=1 // pred_check
      _
    $region27: #{tpu_custom_call.1} parent=1 // pred_check_branch
      %61 = sbr.rel (0) target = $region29
    $region28: #{tpu_custom_call.1} parent=1 // pred_region
      %63 = dma.done [#allocation6], 1024
    $region29: #{tpu_custom_call.1} parent=1 // pred_fallthru
      _
    // Predicated region
    $region30: #{tpu_custom_call.1} parent=1 // pred_check
      _
    $region31: #{tpu_custom_call.1} parent=1 // pred_check_branch
      %65 = sbr.rel (0) target = $region33
    $region32: #{tpu_custom_call.1} parent=1 // pred_region
      %67 = dma.done [#allocation6], 512
    $region33: #{tpu_custom_call.1} parent=1 // pred_fallthru
      _
    %v68 = vld [vmem:[#allocation2] sm:$0xff]
    %v69 = vld [vmem:[#allocation2 + $0x8] sm:$0xff]
    %v70 = vld [vmem:[#allocation2 + $0x10] sm:$0xff]
    %v71 = vld [vmem:[#allocation2 + $0x18] sm:$0xff]
    %v72 = vld [vmem:[#allocation2 + $0x20] sm:$0xff]
    %v73 = vld [vmem:[#allocation2 + $0x28] sm:$0xff]
    %v74 = vld [vmem:[#allocation2 + $0x30] sm:$0xff]
    %v75 = vld [vmem:[#allocation2 + $0x38] sm:$0xff]
    %v76 = vld [vmem:[#allocation5] sm:$0xff]
    %v77 = vld [vmem:[#allocation5 + $0x8] sm:$0xff]
    %v78 = vld [vmem:[#allocation5 + $0x10] sm:$0xff]
    %v79 = vld [vmem:[#allocation5 + $0x18] sm:$0xff]
    %v80 = vld [vmem:[#allocation5 + $0x20] sm:$0xff]
    %v81 = vld [vmem:[#allocation5 + $0x28] sm:$0xff]
    %v82 = vld [vmem:[#allocation5 + $0x30] sm:$0xff]
    %v83 = vld [vmem:[#allocation5 + $0x38] sm:$0xff]
    %v84 = vld [vmem:[#allocation7] sm:$0xff]
    %v85 = vld [vmem:[#allocation7 + $0x8] sm:$0xff]
    %v86 = vld [vmem:[#allocation7 + $0x10] sm:$0xff]
    %v87 = vld [vmem:[#allocation7 + $0x18] sm:$0xff]
    %v88 = vld [vmem:[%s3] sm:$0x3]
    %v89 = vld [vmem:[%s4] sm:$0x1]
    %vm90 = vcmask 523264
    %v92 = vsel %vm90, %v88, 0
    %v95 = vsel %vm90, %v76, 0
    %v98 = vsel %vm90, %v77, 0
    %v101 = vsel %vm90, %v78, 0
    %v104 = vsel %vm90, %v79, 0
    %v107 = vsel %vm90, %v80, 0
    %v110 = vsel %vm90, %v81, 0
    %v113 = vsel %vm90, %v82, 0
    %v116 = vsel %vm90, %v83, 0
    %118 = vmatpush.xpose.msra.mxu0 0.0
    %119 = vmatpush.xpose.msra.mxu0 0.0
    %120 = vmatpush.xpose.msra.mxu0 0.0
    %121 = vmatpush.xpose.msra.mxu0 0.0
    %122 = vmatpush.xpose.msra.mxu0 0.0
    %123 = vmatpush.xpose.msra.mxu0 0.0
    %124 = vmatpush.xpose.msra.mxu0 0.0
    %125 = vmatpush.xpose.msra.mxu0 0.0
    %126 = vmatpush.xpose.msra.mxu0 %v116
    %127 = vmatpush.xpose.msra.mxu0 %v113
    %128 = vmatpush.xpose.msra.mxu0 %v110
    %129 = vmatpush.xpose.msra.mxu0 %v107
    %130 = vmatpush.xpose.msra.mxu0 %v104
    %131 = vmatpush.xpose.msra.mxu0 %v101
    %132 = vmatpush.xpose.msra.mxu0 %v98
    %133 = vmatpush.xpose.msra.mxu0 %v95
    %134 = vmatmul.f32.gmra.mxu0 %v92
    %v135 = vpop.f32.mrf.mxu0
    %v136 = vadd.f32 0.0, %v135
    %137 = vdwg.mxu0
    %v139 = vsel %vm90, %v84, 0
    %v142 = vsel %vm90, %v85, 0
    %v145 = vsel %vm90, %v86, 0
    %v148 = vsel %vm90, %v87, 0
    %v151 = vsel %vm90, %v68, 0
    %v154 = vsel %vm90, %v69, 0
    %v157 = vsel %vm90, %v70, 0
    %v160 = vsel %vm90, %v71, 0
    %v163 = vsel %vm90, %v72, 0
    %v166 = vsel %vm90, %v73, 0
    %v169 = vsel %vm90, %v74, 0
    %v172 = vsel %vm90, %v75, 0
    %174 = vmatpush.xpose.msra.mxu0 0.0
    %175 = vmatpush.xpose.msra.mxu0 0.0
    %176 = vmatpush.xpose.msra.mxu0 0.0
    %177 = vmatpush.xpose.msra.mxu0 0.0
    %178 = vmatpush.xpose.msra.mxu0 0.0
    %179 = vmatpush.xpose.msra.mxu0 0.0
    %180 = vmatpush.xpose.msra.mxu0 0.0
    %181 = vmatpush.xpose.msra.mxu0 0.0
    %182 = vmatpush.xpose.msra.mxu0 %v172
    %183 = vmatpush.xpose.msra.mxu0 %v169
    %184 = vmatpush.xpose.msra.mxu0 %v166
    %185 = vmatpush.xpose.msra.mxu0 %v163
    %186 = vmatpush.xpose.msra.mxu0 %v160
    %187 = vmatpush.xpose.msra.mxu0 %v157
    %188 = vmatpush.xpose.msra.mxu0 %v154
    %189 = vmatpush.xpose.msra.mxu0 %v151
    %190 = vmatmul.f32.gmra.mxu0 %v139
    %v191 = vpop.f32.mrf.mxu0
    %v192 = vadd.f32 0.0, %v191
    %193 = vmatmul.f32.gmra.mxu0 %v142
    %v194 = vpop.f32.mrf.mxu0
    %v195 = vadd.f32 0.0, %v194
    %196 = vmatmul.f32.gmra.mxu0 %v145
    %v197 = vpop.f32.mrf.mxu0
    %v198 = vadd.f32 0.0, %v197
    %199 = vmatmul.f32.gmra.mxu0 %v148
    %v200 = vpop.f32.mrf.mxu0
    %v201 = vadd.f32 0.0, %v200
    %202 = vdwg.mxu0
    %v203 = vadd.f32 %v136, %v88
    %v204 = vadd.f32 %v136, 1.0
    %v206 = vrot.slane %v204, 7
    %v208 = vrcp.pop %v206
    %v209 = vmul.f32 %v206, %v208
    %v210 = vsub.f32 1.0, %v209
    %v211 = vmul.f32 %v208, %v210
    %v212 = vadd.f32 %v208, %v211
    %vm213 = vweird.f32 %v206
    %vm214 = vweird.f32 %v208
    %vm215 = vmor %vm213, %vm214
    %v216 = vsel %vm215, %v208, %v212
    %v217 = vand.u32 2147483647, %v206
    %vm218 = vcmp.eq.f32.partialorder %v217, 8.507059e+37
    %v219 = vand.u32 %v206, 2147483648
    %v220 = vor.u32 1.1754944e-38, %v219
    %v221 = vsel %vm218, %v220, %v216
    %v222 = vmul.f32 %v203, %v221
    %vm223 = vcmask 517121
    %v224 = vsel %vm223, %v222, inf
    %225 = vmin.xlane.f32.xlu0 %v224
    %v226 = vpop.xlane.xlu0 %225
    %v227 = vsel %vm223, %v222, -inf
    %228 = vmax.xlane.f32.xlu0 %v227
    %v229 = vpop.xlane.xlu0 %228
    %v230 = vsub.f32 %v229, %v226
    %v231 = vsub.f32 %v222, %v226
    %vm232 = vcmp.gt.f32.partialorder %v230, 0.0
    %v233 = vsel %vm232, %v230, 1.0
    %v234 = vrcp.pop %v233
    %v235 = vmul.f32 %v233, %v234
    %v236 = vsub.f32 1.0, %v235
    %v237 = vmul.f32 %v234, %v236
    %v238 = vadd.f32 %v234, %v237
    %vm239 = vweird.f32 %v233
    %vm240 = vweird.f32 %v234
    %vm241 = vmor %vm239, %vm240
    %v242 = vsel %vm241, %v234, %v238
    %v243 = vand.u32 2147483647, %v233
    %vm244 = vcmp.eq.f32.partialorder %v243, 8.507059e+37
    %v245 = vand.u32 %v233, 2147483648
    %v246 = vor.u32 1.1754944e-38, %v245
    %v247 = vsel %vm244, %v246, %v242
    %v248 = vmul.f32 %v231, %v247
    %v249 = vadd.f32 %v136, 1e-08
    %v251 = vrot.slane %v249, 7
    %v253 = vrcp.pop %v251
    %v254 = vmul.f32 %v251, %v253
    %v255 = vsub.f32 1.0, %v254
    %v256 = vmul.f32 %v253, %v255
    %v257 = vadd.f32 %v253, %v256
    %vm258 = vweird.f32 %v251
    %vm259 = vweird.f32 %v253
    %vm260 = vmor %vm258, %vm259
    %v261 = vsel %vm260, %v253, %v257
    %v262 = vand.u32 2147483647, %v251
    %vm263 = vcmp.eq.f32.partialorder %v262, 8.507059e+37
    %v264 = vand.u32 %v251, 2147483648
    %v265 = vor.u32 1.1754944e-38, %v264
    %v266 = vsel %vm263, %v265, %v261
    %v267 = vmul.f32 %v136, %v266
    %v268 = vmul.f32 %v267, 2.0
    %v269 = vmul.f32 %v268, %v88
    %v270 = vadd.f32 %v269, 1e-08
    %v271 = vmul.f32 %v267, %v267
    %v272 = vmul.f32 %v88, %v88
    %v273 = vadd.f32 %v271, %v272
    %v274 = vadd.f32 %v273, 1e-08
    %v275 = vrcp.pop %v274
    %v276 = vmul.f32 %v274, %v275
    %v277 = vsub.f32 1.0, %v276
    %v278 = vmul.f32 %v275, %v277
    %v279 = vadd.f32 %v275, %v278
    %vm280 = vweird.f32 %v274
    %vm281 = vweird.f32 %v275
    %vm282 = vmor %vm280, %vm281
    %v283 = vsel %vm282, %v275, %v279
    %v284 = vand.u32 2147483647, %v274
    %vm285 = vcmp.eq.f32.partialorder %v284, 8.507059e+37
    %v286 = vand.u32 %v274, 2147483648
    %v287 = vor.u32 1.1754944e-38, %v286
    %v288 = vsel %vm285, %v287, %v283
    %v289 = vmul.f32 %v270, %v288
    %v290 = vmul.f32 %v192, %v84
    %v291 = vmul.f32 %v195, %v85
    %v292 = vmul.f32 %v198, %v86
    %v293 = vmul.f32 %v201, %v87
    %v294 = vsel %vm90, %v290, 0.0
    %v295 = vsel %vm90, %v291, 0.0
    %v296 = vadd.f32 %v294, %v295
    %v297 = vsel %vm90, %v292, 0.0
    %v298 = vadd.f32 %v296, %v297
    %v299 = vsel %vm90, %v293, 0.0
    %v300 = vadd.f32 %v298, %v299
    %v301 = vrot.slane %v300, 4
    %v302 = vadd.f32 %v300, %v301
    %v303 = vrot.slane %v302, 2
    %v304 = vadd.f32 %v302, %v303
    %v305 = vrot.slane %v304, 1
    %v306 = vadd.f32 %v304, %v305
    %v307 = vmul.f32 %v192, %v192
    %v308 = vmul.f32 %v195, %v195
    %v309 = vmul.f32 %v198, %v198
    %v310 = vmul.f32 %v201, %v201
    %v311 = vsel %vm90, %v307, 0.0
    %v312 = vsel %vm90, %v308, 0.0
    %v313 = vadd.f32 %v311, %v312
    %v314 = vsel %vm90, %v309, 0.0
    %v315 = vadd.f32 %v313, %v314
    %v316 = vsel %vm90, %v310, 0.0
    %v317 = vadd.f32 %v315, %v316
    %v318 = vrot.slane %v317, 4
    %v319 = vadd.f32 %v317, %v318
    %v320 = vrot.slane %v319, 2
    %v321 = vadd.f32 %v319, %v320
    %v322 = vrot.slane %v321, 1
    %v323 = vadd.f32 %v321, %v322
    %v324 = vmul.f32 %v84, %v84
    %v325 = vmul.f32 %v85, %v85
    %v326 = vmul.f32 %v86, %v86
    %v327 = vmul.f32 %v87, %v87
    %v328 = vsel %vm90, %v324, 0.0
    %v329 = vsel %vm90, %v325, 0.0
    %v330 = vadd.f32 %v328, %v329
    %v331 = vsel %vm90, %v326, 0.0
    %v332 = vadd.f32 %v330, %v331
    %v333 = vsel %vm90, %v327, 0.0
    %v334 = vadd.f32 %v332, %v333
    %v335 = vrot.slane %v334, 4
    %v336 = vadd.f32 %v334, %v335
    %v337 = vrot.slane %v336, 2
    %v338 = vadd.f32 %v336, %v337
    %v339 = vrot.slane %v338, 1
    %v340 = vadd.f32 %v338, %v339
    %v341 = vmax.f32 %v323, 1e-24
    %v342 = vrsqrt.pop %v341
    %v343 = vmul.f32 %v342, %v341
    %v344 = vmul.f32 %v343, %v342
    %v345 = vmul.f32 0.5, %v344
    %v346 = vsub.f32 1.5, %v345
    %v347 = vmul.f32 %v342, %v346
    %vm348 = vweird.f32 %v341
    %vm349 = vweird.f32 %v342
    %vm350 = vmor %vm348, %vm349
    %v351 = vsel %vm350, %v342, %v347
    %v352 = vmul.f32 %v306, %v351
    %v353 = vmax.f32 %v340, 1e-24
    %v354 = vrsqrt.pop %v353
    %v355 = vmul.f32 %v354, %v353
    %v356 = vmul.f32 %v355, %v354
    %v357 = vmul.f32 0.5, %v356
    %v358 = vsub.f32 1.5, %v357
    %v359 = vmul.f32 %v354, %v358
    %vm360 = vweird.f32 %v353
    %vm361 = vweird.f32 %v354
    %vm362 = vmor %vm360, %vm361
    %v363 = vsel %vm362, %v354, %v359
    %v364 = vmul.f32 %v352, %v363
    %v365 = vmul.f32 %v364, %v289
    %v366 = vadd.f32 %v365, %v248
    %v367 = vsub.f32 0.0, %v366
    %v368 = vmax.f32 %v367, 0.0
    %v369 = vand.u32 2147483647, %v367
    %v370 = vsub.f32 0.0, %v369
    %v371 = vmul.f32 %v370, 1.442695
    %v372 = vpow.pop %v371
    %v373 = vadd.f32 %v372, 1.0
    %v374 = vlog2.pop %v373
    %v375 = vmul.f32 %v374, 0.6931472
    %v376 = vadd.f32 %v368, %v375
    %v377 = vsub.f32 0.0, %v376
    %v378 = vmax.f32 %v89, 1e-07
    %v379 = vmin.f32 %v378, 0.9999999
    %v380 = vlog2.pop %v379
    %v381 = vmul.f32 %v380, 0.6931472
    %v382 = vsub.f32 0.0, %v381
    %v383 = vlog2.pop %v382
    %v384 = vmul.f32 %v383, 0.6931472
    %v385 = vsub.f32 0.0, %v384
    %v387 = vperm.slane %v385, 0
    %v389 = vadd.f32 %v377, %v387
    %390 = vst.msk [vmem:[#allocation8 - $0x1] sm:$0x2] %vm223, %v389
    %vm391 = vcmask 516096
    %392 = vst.msk [vmem:[#allocation8 + $0x1] sm:$0x1] %vm391, %v136
    // Predicated region
    $region34: #{tpu_custom_call.1} parent=1 // pred_check
      _
    $region35: #{tpu_custom_call.1} parent=1 // pred_check_branch
      %394 = sbr.rel (0) target = $region37
    $region36: #{tpu_custom_call.1} parent=1 // pred_region
      %396 = vsyncadd [#allocation4], 0
      %s398 = sshll.u32 [#allocation8], 4
      %s399 = int_to_ptr.vmem [resolvable:$true] %s398
      %s400 = sshll.u32 %s5, 4
      %s401 = int_to_ptr.hbm [resolvable:$true] %s400
      %403 = dma.vmem_to_hbm [thread:$0]  %s399, 32, %s401, [#allocation4]
    $region37: #{tpu_custom_call.1} parent=1 // pred_fallthru
      _
    // Predicated region
    $region38: #{tpu_custom_call.1} parent=1 // pred_check
      _
    $region39: #{tpu_custom_call.1} parent=1 // pred_check_branch
      %405 = sbr.rel (0) target = $region41
    $region40: #{tpu_custom_call.1} parent=1 // pred_region
      %407 = dma.done [#allocation4], 32
    $region41: #{tpu_custom_call.1} parent=1 // pred_fallthru
      _
    %408 = vsyncpa [#allocation3], 1
    %409 = vsyncpa [#allocation6], 1
    %410 = vsyncpa [#allocation4], 1

</llo_original>
